<compile_context>
chip_gen: v6e
topology: v6e:2x2x1
jax: 0.10.0
libtpu: 0.0.40
codegen_flags: <defaults>
</compile_context>

<pallas_src>
import functools

import jax
import jax.numpy as jnp
from jax import lax
from jax.experimental import pallas as pl
from jax.experimental.pallas import tpu as pltpu


def _round_up(x, m):
    return ((x + m - 1) // m) * m


def _cdiv(a, b):
    return -(-a // b)


def _vmem_capacity_bytes():
    try:
        return int(pltpu.get_tpu_info().vmem_capacity_bytes)
    except Exception:
        return 64 << 20   # conservative fallback (v7x-sized VMEM)


def _cin_kernel(x_ref, z_ref, w_ref, b_ref, o_ref, *, eps):
    """One (batch-block, channel-block) tile.

    x_ref: (BN, BC, HW)   activations
    z_ref: (BN, Cz, HW)   conditioning noise
    w_ref: (2, BC, Cz)    stacked [w_shift ; w_scale] 1x1-conv weights
    b_ref: (2, BC, 1)     stacked biases
    o_ref: (BN, BC, HW)
    """
    bn, _, hw = x_ref.shape

    # Loop-invariant weight/bias loads, hoisted out of the batch loop.
    w = w_ref[...].astype(jnp.float32)
    b = b_ref[...].astype(jnp.float32)
    w_shift, w_scale = w[0], w[1]            # (BC, Cz)
    b_shift, b_scale = b[0], b[1]            # (BC, 1)

    inv_hw = jnp.float32(1.0 / hw)
    # TODO(synk): HW == 1 makes torch.var NaN (0/0); we clamp the divisor here.
    inv_hw_m1 = jnp.float32(1.0 / max(hw - 1, 1))
    eps_f = jnp.float32(eps)

    def one_batch(i):
        x = x_ref[i].astype(jnp.float32)      # (BC, HW)
        z = z_ref[i].astype(jnp.float32)      # (Cz, HW)

        # Conditioning 1x1 convs on the MXU (free slot; keeps the VALU for the
        # normalization math).  Bias add + ReLU stay on the VPU (2 ops/elem).
        shift = jnp.dot(w_shift, z, preferred_element_type=jnp.float32) + b_shift
        scale = jnp.dot(w_scale, z, preferred_element_type=jnp.float32) + b_scale
        shift = jnp.maximum(shift, 0.0)       # ReLU
        scale = jnp.maximum(scale, 0.0)       # ReLU

        # Two-pass instance-norm statistics over the lane (spatial) axis.
        mean = jnp.sum(x, axis=1, keepdims=True) * inv_hw          # (BC, 1)
        d = x - mean
        var = jnp.sum(d * d, axis=1, keepdims=True) * inv_hw_m1    # unbiased
        std = lax.rsqrt(var + eps_f)

        o_ref[i] = (d * std * scale + shift).astype(o_ref.dtype)

    if bn == 1:
        one_batch(0)
    else:
        def body(i, carry):
            one_batch(i)
            return carry
        lax.fori_loop(0, bn, body, 0, unroll=True)


def _choose_tiles(n, cx, cz, hw, budget_bytes, target_steps=4):
    """Pick (batch sub-block BN, channel block BC).

    BC is a multiple of 8 (partial last block allowed) or equal to Cx.  Blocks
    are sized against `budget_bytes` (f32 footprint of x+out+z tiles); the grid
    is kept at >= target_steps steps when the problem allows so DMA/compute
    overlap and both v7x TensorCores get work.
    """
    def blk_bytes(bn, bc):
        return 4 * bn * (2 * bc + cz) * hw

    cands = sorted({cx} | set(range(8, cx, 8)), reverse=True)

    # Largest channel block that fits the budget.
    bc = next((c for c in cands if blk_bytes(1, c) <= budget_bytes), cands[-1])
    # TODO(synk): a single minimum-size block over budget (very large H*W)
    # would need a spatial grid axis with chunked statistics; not implemented.

    # If the grid collapses, shrink BC for more steps, but keep blocks >= 1 MiB
    # so per-step overhead (~0.35us) stays negligible.
    for c in cands:
        if c >= bc:
            continue
        if n * _cdiv(cx, bc) >= target_steps:
            break
        if blk_bytes(1, c) < (1 << 20):
            break
        bc = c

    # Pack several batch elements per step only when blocks are tiny, and never
    # at the cost of dropping below target_steps grid steps.
    bn = 1
    if blk_bytes(1, bc) < (2 << 20):
        for b in sorted((d for d in range(2, n + 1) if n % d == 0), reverse=True):
            if (blk_bytes(b, bc) <= min(budget_bytes, 2 << 20)
                    and (n // b) * _cdiv(cx, bc) >= target_steps):
                bn = b
                break
    return bn, bc


def cond_instance_norm(x_nchw, noise_nchw, w_shift, b_shift, w_scale, b_scale,
                       eps=1e-5):
    """Forward of CondInstanceNorm.

    x_nchw:     (N, C_x, H, W)        activations (f32 / bf16 / fp16)
    noise_nchw: (N, C_z, H, W)        conditioning latents
    w_*:        (C_x, C_z[, 1, 1])    1x1 conv weights
    b_*:        (C_x,)                biases
    """
    N, Cx, H, W = x_nchw.shape
    Nz, Cz, Hn, Wn = noise_nchw.shape
    assert Nz == N and (Hn, Wn) == (H, W), "noise batch/spatial must match x"
    HW = H * W
    out_dtype = x_nchw.dtype

    # Free reshapes only — no pad / slice HBM passes.
    x = x_nchw.reshape(N, Cx, HW)
    z = noise_nchw.reshape(N, Cz, HW)

    # Pre-stacked conditioning weights/biases: one weight DMA + one bias DMA.
    w_all = jnp.stack([w_shift.reshape(Cx, Cz),
                       w_scale.reshape(Cx, Cz)]).astype(jnp.float32)   # (2,Cx,Cz)
    b_all = jnp.stack([b_shift.reshape(Cx, 1),
                       b_scale.reshape(Cx, 1)]).astype(jnp.float32)    # (2,Cx,1)

    # Generation-aware block budget / VMEM limit (v7x: 64 MiB, v5e/v6e: 128).
    vmem_cap = _vmem_capacity_bytes()
    budget = (24 << 20) if vmem_cap >= (100 << 20) else (12 << 20)
    BN, BC = _choose_tiles(N, Cx, Cz, HW, budget)
    grid = (N // BN, _cdiv(Cx, BC))

    x_item = jnp.dtype(x.dtype).itemsize
    z_item = jnp.dtype(z.dtype).itemsize
    o_item = jnp.dtype(out_dtype).itemsize
    blk_io = BN * HW * (BC * (x_item + o_item) + Cz * z_item)
    need = 2 * blk_io + (4 << 20)             # double-buffered tiles + slack
    vmem_limit = int(min(max(need, 32 << 20), vmem_cap - (8 << 20)))

    # Advisory cost so XLA schedules around this long, memory-bound call.
    cost = pl.CostEstimate(
        flops=int(2 * 2 * N * Cx * Cz * HW + 10 * N * Cx * HW),
        transcendentals=int(N * Cx),
        bytes_accessed=int(N * HW * (Cx * (x_item + o_item) + Cz * z_item)
                           + 4 * (w_all.size + b_all.size)),
    )

    kernel = functools.partial(_cin_kernel, eps=eps)
    out = pl.pallas_call(
        kernel,
        out_shape=jax.ShapeDtypeStruct((N, Cx, HW), out_dtype),
        grid_spec=pltpu.PrefetchScalarGridSpec(
            num_scalar_prefetch=0,
            grid=grid,
            in_specs=[
                pl.BlockSpec((BN, BC, HW), lambda nb, cb: (nb, cb, 0)),   # x
                pl.BlockSpec((BN, Cz, HW), lambda nb, cb: (nb, 0, 0)),    # noise
                pl.BlockSpec((2, BC, Cz), lambda nb, cb: (0, cb, 0)),     # weights
                pl.BlockSpec((2, BC, 1), lambda nb, cb: (0, cb, 0)),      # biases
            ],
            out_specs=pl.BlockSpec((BN, BC, HW), lambda nb, cb: (nb, cb, 0)),
        ),
        compiler_params=pltpu.CompilerParams(
            dimension_semantics=("parallel", "parallel"),
            vmem_limit_bytes=vmem_limit),
        cost_estimate=cost,
    )(x, z, w_all, b_all)

    return out.reshape(N, Cx, H, W)


def _reference(x, z, ws, bs, wc, bc, eps=1e-5):
    # Pure-JAX reference mirroring the PyTorch forward (f32 math).
    x = x.astype(jnp.float32)
    z = z.astype(jnp.float32)
    N, Cx, H, W = x.shape
    HW = H * W
    shift = jnp.maximum(jnp.einsum('oc,nchw->nohw', ws, z)
                        + bs[None, :, None, None], 0.0)
    scale = jnp.maximum(jnp.einsum('oc,nchw->nohw', wc, z)
                        + bc[None, :, None, None], 0.0)
    xr = x.reshape(N, Cx, HW)
    mean = xr.mean(axis=2, keepdims=True)
    var = jnp.sum((xr - mean) ** 2, axis=2, keepdims=True) / (HW - 1)  # unbiased
    norm = ((xr - mean) * lax.rsqrt(var + eps)).reshape(N, Cx, H, W)
    return norm * scale + shift


def _run_case(key, N, x_dim, z_dim, H, W, dtype=jnp.float32, atol=1e-4, rtol=1e-4):
    k1, k2, k3, k4, k5, k6 = jax.random.split(key, 6)
    x = jax.random.normal(k1, (N, x_dim, H, W), dtype=jnp.float32).astype(dtype)
    noise = jax.random.normal(k2, (N, z_dim, H, W), dtype=jnp.float32).astype(dtype)
    w_shift = jax.random.normal(k3, (x_dim, z_dim), dtype=jnp.float32) * 0.3
    b_shift = jax.random.normal(k4, (x_dim,), dtype=jnp.float32) * 0.1
    w_scale = jax.random.normal(k5, (x_dim, z_dim), dtype=jnp.float32) * 0.3
    b_scale = jax.random.normal(k6, (x_dim,), dtype=jnp.float32) * 0.1

    out = cond_instance_norm(x, noise, w_shift, b_shift, w_scale, b_scale)
    out = jax.block_until_ready(out)
    assert out.shape == (N, x_dim, H, W)
    assert out.dtype == dtype
    ref = _reference(x, noise, w_shift, b_shift, w_scale, b_scale)
    assert jnp.allclose(out.astype(jnp.float32), ref, atol=atol, rtol=rtol), \
        f"mismatch vs reference for case {(N, x_dim, z_dim, H, W, dtype)}"


if __name__ == "__main__":
    key = jax.random.PRNGKey(0)
    ka, kb, kc, kd = jax.random.split(key, 4)

    # Case A: module-typical small shapes (tiny z_dim, aligned HW) — MXU conv.
    _run_case(ka, N=2, x_dim=4, z_dim=3, H=16, W=16)
    # Case B: unaligned channel count and H*W (partial sublanes/lanes, no pad).
    _run_case(kb, N=3, x_dim=5, z_dim=20, H=7, W=9)
    # Case C: bf16 I/O path (internal math stays f32).
    _run_case(kc, N=2, x_dim=8, z_dim=4, H=16, W=8,
              dtype=jnp.bfloat16, atol=5e-2, rtol=5e-2)
    # Case D: batch sub-blocking path (BN > 1, in-kernel fori_loop over batch).
    _run_case(kd, N=8, x_dim=4, z_dim=3, H=8, W=8)

    print("KERNEL_OK")
</pallas_src>

<mosaic_0001>
module attributes {stable_mosaic.version = 11 : i64} {
  func.func @_cin_kernel(%arg0: i32, %arg1: i32, %arg2: memref<1x4x256xf32, #tpu.memory_space<vmem>>, %arg3: memref<1x3x256xf32, #tpu.memory_space<vmem>>, %arg4: memref<2x4x3xf32, #tpu.memory_space<vmem>>, %arg5: memref<2x4x1xf32, #tpu.memory_space<vmem>>, %arg6: memref<1x4x256xf32, #tpu.memory_space<vmem>>) attributes {dimension_semantics = [#tpu.dimension_semantics<parallel>, #tpu.dimension_semantics<parallel>], iteration_bounds = array<i64: 2, 1>, scalar_prefetch = 0 : i64, scratch_operands = 0 : i64, tpu.core_type = #tpu.core_type<tc>, window_params = [{transform_indices = @transform_0, window_bounds = array<i64: 1, 4, 256>}, {transform_indices = @transform_1, window_bounds = array<i64: 1, 3, 256>}, {transform_indices = @transform_2, window_bounds = array<i64: 2, 4, 3>}, {transform_indices = @transform_3, window_bounds = array<i64: 2, 4, 1>}, {transform_indices = @transform_4, window_bounds = array<i64: 1, 4, 256>}]} {
    %c0 = arith.constant 0 : index
    %c0_0 = arith.constant 0 : index
    %c0_1 = arith.constant 0 : index
    %0 = vector.load %arg4[%c0, %c0_0, %c0_1] : memref<2x4x3xf32, #tpu.memory_space<vmem>>, vector<2x4x3xf32>
    %c0_2 = arith.constant 0 : index
    %c0_3 = arith.constant 0 : index
    %c0_4 = arith.constant 0 : index
    %1 = vector.load %arg5[%c0_2, %c0_3, %c0_4] : memref<2x4x1xf32, #tpu.memory_space<vmem>>, vector<2x4x1xf32>
    %2 = vector.extract_strided_slice %0 {offsets = [0, 0, 0], sizes = [1, 4, 3], strides = [1, 1, 1]} : vector<2x4x3xf32> to vector<1x4x3xf32>
    %3 = vector.shape_cast %2 : vector<1x4x3xf32> to vector<4x3xf32>
    %4 = vector.extract_strided_slice %0 {offsets = [1, 0, 0], sizes = [1, 4, 3], strides = [1, 1, 1]} : vector<2x4x3xf32> to vector<1x4x3xf32>
    %5 = vector.shape_cast %4 : vector<1x4x3xf32> to vector<4x3xf32>
    %6 = vector.extract_strided_slice %1 {offsets = [0, 0, 0], sizes = [1, 4, 1], strides = [1, 1, 1]} : vector<2x4x1xf32> to vector<1x4x1xf32>
    %7 = vector.shape_cast %6 : vector<1x4x1xf32> to vector<4x1xf32>
    %8 = vector.extract_strided_slice %1 {offsets = [1, 0, 0], sizes = [1, 4, 1], strides = [1, 1, 1]} : vector<2x4x1xf32> to vector<1x4x1xf32>
    %9 = vector.shape_cast %8 : vector<1x4x1xf32> to vector<4x1xf32>
    %c0_5 = arith.constant 0 : index
    %c0_6 = arith.constant 0 : index
    %c0_7 = arith.constant 0 : index
    %10 = vector.load %arg2[%c0_5, %c0_6, %c0_7] : memref<1x4x256xf32, #tpu.memory_space<vmem>>, vector<1x4x256xf32>
    %11 = vector.shape_cast %10 : vector<1x4x256xf32> to vector<4x256xf32>
    %c0_8 = arith.constant 0 : index
    %c0_9 = arith.constant 0 : index
    %c0_10 = arith.constant 0 : index
    %12 = vector.load %arg3[%c0_8, %c0_9, %c0_10] : memref<1x3x256xf32, #tpu.memory_space<vmem>>, vector<1x3x256xf32>
    %13 = vector.shape_cast %12 : vector<1x3x256xf32> to vector<3x256xf32>
    %cst = arith.constant dense<0.000000e+00> : vector<4x256xf32>
    %14 = tpu.matmul %3, %13, %cst {dimension_numbers = #tpu.dot_dimension_numbers<[1], [0], [0], [1], [0, 0, 1, 1], [], []>} : vector<4x3xf32>, vector<3x256xf32>, vector<4x256xf32> -> vector<4x256xf32>
    %15 = vector.broadcast %7 : vector<4x1xf32> to vector<4x256xf32>
    %16 = arith.addf %14, %15 : vector<4x256xf32>
    %cst_11 = arith.constant dense<0.000000e+00> : vector<4x256xf32>
    %17 = tpu.matmul %5, %13, %cst_11 {dimension_numbers = #tpu.dot_dimension_numbers<[1], [0], [0], [1], [0, 0, 1, 1], [], []>} : vector<4x3xf32>, vector<3x256xf32>, vector<4x256xf32> -> vector<4x256xf32>
    %18 = vector.broadcast %9 : vector<4x1xf32> to vector<4x256xf32>
    %19 = arith.addf %17, %18 : vector<4x256xf32>
    %cst_12 = arith.constant 0.000000e+00 : f32
    %20 = vector.broadcast %cst_12 : f32 to vector<4x256xf32>
    %21 = arith.maximumf %16, %20 : vector<4x256xf32>
    %cst_13 = arith.constant 0.000000e+00 : f32
    %22 = vector.broadcast %cst_13 : f32 to vector<4x256xf32>
    %23 = arith.maximumf %19, %22 : vector<4x256xf32>
    %cst_14 = arith.constant dense<0.000000e+00> : vector<4xf32>
    %24 = vector.multi_reduction <add>, %11, %cst_14 [1] : vector<4x256xf32> to vector<4xf32>
    %25 = vector.shape_cast %24 : vector<4xf32> to vector<4x1xf32>
    %cst_15 = arith.constant 3.906250e-03 : f32
    %26 = vector.broadcast %cst_15 : f32 to vector<4x1xf32>
    %27 = arith.mulf %25, %26 : vector<4x1xf32>
    %28 = vector.broadcast %27 : vector<4x1xf32> to vector<4x256xf32>
    %29 = arith.subf %11, %28 : vector<4x256xf32>
    %30 = arith.mulf %29, %29 : vector<4x256xf32>
    %cst_16 = arith.constant dense<0.000000e+00> : vector<4xf32>
    %31 = vector.multi_reduction <add>, %30, %cst_16 [1] : vector<4x256xf32> to vector<4xf32>
    %32 = vector.shape_cast %31 : vector<4xf32> to vector<4x1xf32>
    %cst_17 = arith.constant 0.00392156886 : f32
    %33 = vector.broadcast %cst_17 : f32 to vector<4x1xf32>
    %34 = arith.mulf %32, %33 : vector<4x1xf32>
    %cst_18 = arith.constant 9.99999974E-6 : f32
    %35 = vector.broadcast %cst_18 : f32 to vector<4x1xf32>
    %36 = arith.addf %34, %35 : vector<4x1xf32>
    %37 = math.rsqrt %36 : vector<4x1xf32>
    %38 = vector.broadcast %37 : vector<4x1xf32> to vector<4x256xf32>
    %39 = arith.mulf %29, %38 : vector<4x256xf32>
    %40 = arith.mulf %39, %23 : vector<4x256xf32>
    %41 = arith.addf %40, %21 : vector<4x256xf32>
    %c0_19 = arith.constant 0 : index
    %c0_20 = arith.constant 0 : index
    %c0_21 = arith.constant 0 : index
    %42 = vector.load %arg6[%c0_19, %c0_20, %c0_21] : memref<1x4x256xf32, #tpu.memory_space<vmem>>, vector<1x4x256xf32>
    %43 = vector.shape_cast %42 : vector<1x4x256xf32> to vector<4x256xf32>
    %44 = vector.shape_cast %41 : vector<4x256xf32> to vector<1x4x256xf32>
    tpu.vector_store %arg6[%c0_19, %c0_20, %c0_21], %44 {strides = array<i32>} : memref<1x4x256xf32, #tpu.memory_space<vmem>>, vector<1x4x256xf32>,
    return
  }
  func.func @transform_0(%arg0: i32, %arg1: i32) -> (i32, i32, i32) {
    %c0_i32 = arith.constant 0 : i32
    %c0_i32_0 = arith.constant 0 : i32
    return %arg0, %arg1, %c0_i32 : i32, i32, i32
  }
  func.func @transform_1(%arg0: i32, %arg1: i32) -> (i32, i32, i32) {
    %c0_i32 = arith.constant 0 : i32
    %c0_i32_0 = arith.constant 0 : i32
    %c0_i32_1 = arith.constant 0 : i32
    return %arg0, %c0_i32, %c0_i32_0 : i32, i32, i32
  }
  func.func @transform_2(%arg0: i32, %arg1: i32) -> (i32, i32, i32) {
    %c0_i32 = arith.constant 0 : i32
    %c0_i32_0 = arith.constant 0 : i32
    %c0_i32_1 = arith.constant 0 : i32
    return %c0_i32, %arg1, %c0_i32_0 : i32, i32, i32
  }
  func.func @transform_3(%arg0: i32, %arg1: i32) -> (i32, i32, i32) {
    %c0_i32 = arith.constant 0 : i32
    %c0_i32_0 = arith.constant 0 : i32
    %c0_i32_1 = arith.constant 0 : i32
    return %c0_i32, %arg1, %c0_i32_0 : i32, i32, i32
  }
  func.func @transform_4(%arg0: i32, %arg1: i32) -> (i32, i32, i32) {
    %c0_i32 = arith.constant 0 : i32
    %c0_i32_0 = arith.constant 0 : i32
    return %arg0, %arg1, %c0_i32 : i32, i32, i32
  }
}

</mosaic_0001>

<llo_original>
// kernel: tpu_custom_call.1
$region0: #{tpu_custom_call.1}
  #allocation0 [shape = 'u32[]', space=smem, size = 0x4, offset = 0x4, fixed_abs, tag = 'smem constant byte address 0x4 - core index']
  #allocation1 [shape = 'u32[144,128]{1,0:T(1,128)}', space=vmem, size = 0x12000, scoped, tag = 'internal scratch']
  %s0 = inlined_call_operand.vmem [shape: f32[2,4,256], index: 0, kind: input, shape index: {}]
  %s1 = inlined_call_operand.vmem [shape: f32[2,3,256], index: 1, kind: input, shape index: {}]
  %s2 = inlined_call_operand.vmem [shape: f32[2,4,3], index: 2, kind: input, shape index: {}]
  %s3 = inlined_call_operand.vmem [shape: f32[2,4,1], index: 3, kind: input, shape index: {}]
  %s4 = inlined_call_operand.hbm [shape: f32[2,4,256], index: 4, kind: output, shape index: {}]
  %s5 = sld [smem:[#allocation0]]
  $region49: #{tpu_custom_call.1} parent=0
    _
  %s7 = ssub.s32 1, %s5
  %s8 = scalar_select 0, %s7, %s5
  $region1: #{tpu_custom_call.1} parent=0
    #allocation2 [shape = 'u8[8192]{0}', space=vmem, size = 0x2000, scoped, tag = 'output window, operand 0']
    #allocation3 [shape = 's32[2]{0}', space=sflag, size = 0x8, scoped, tag = 'scoped memory for tpu_custom_call.1']
    %9 = vsyncpa [#allocation3], 0
    %s10 = scalar_lea.sflag [#allocation3], 1
    %11 = vsyncpa %s10, 0
    loop: start=0, step=1, limit=4
    $region2: #{tpu_custom_call.1} parent=1 // loop_pre_header
      _
    $region3: #{tpu_custom_call.1} parent=1 // loop_header
      %s13 = sphi 0, %s17
      %p14 = scmp.ge.s32.totalorder %s13, 4
      %s20 = sphi 0, %s32
      %s21 = sphi 0, %s28
      %s22 = sphi 0, %s20
      %s23 = sphi 0, %s21
      %s24 = sphi 0, %s22
      %s25 = sphi 0, %s23
      %s37 = sphi 0, %s39
      %s40 = sphi 0, %s37
      %s41 = sphi 0, %s40
      %s57 = sphi 0, %s41
      %s63 = sphi 0, %s65
      %s66 = sphi 0, %s63
      %s67 = sphi 0, %s66
      %s83 = sphi 0, %s67
      %s89 = sphi 0, %s91
      %s92 = sphi 0, %s89
      %s93 = sphi 0, %s92
      %s109 = sphi 0, %s93
      %s115 = sphi 0, %s117
      %s118 = sphi 0, %s115
      %s119 = sphi 0, %s118
      %s135 = sphi 0, %s119
      %s143 = sphi 0, %s145
      %s146 = sphi 0, %s143
      %s147 = sphi 0, %s146
      %s163 = sphi 0, %s147
    $region4: #{tpu_custom_call.1} parent=1 // loop_header_branch
      %16 = sbr.rel (%p14) target = $region8
    $region5: #{tpu_custom_call.1} parent=1 // loop_body
      %s18 = ssub.s32 %s13, 1
      %s19 = ssub.s32 %s13, 2
      %s26 = sadd.s32 1, %s21
      %p27 = scmp.ge.s32.totalorder %s26, 1
      %s28 = scalar_select %p27, 0, %s26
      %s29 = sadd.s32 1, %s20
      %s30 = scalar_select %p27, %s29, %s20
      %p31 = scmp.ge.s32.totalorder %s30, 2
      %s32 = scalar_select %p31, 0, %s30
      %s33 = ssub.s32 %s20, %s32
      %s34 = ssub.s32 %s21, %s28
      %s35 = sor.u32 %s33, %s34
      %p36 = scmp.eq.s32.totalorder %s35, 0
      %s38 = sadd.s32 %s37, 1
      %s39 = scalar_select %p36, %s37, %s38
      %p42 = pneg %p36
      %p43 = scmp.eq.s32.totalorder %s13, 1
      %p44 = por %p42, %p43
      %p45 = scmp.ne.s32.totalorder %s37, %s40
      %p46 = scmp.eq.s32.totalorder %s13, 0
      %p47 = por %p45, %p46
      %p48 = scmp.ne.s32.totalorder %s37, %s40
      %p49 = scmp.eq.s32.totalorder %s18, 1
      %p50 = por %p48, %p49
      %p51 = scmp.ne.s32.totalorder %s40, %s41
      %p52 = scmp.eq.s32.totalorder %s18, 0
      %p53 = por %p51, %p52
      %p54 = scmp.ne.s32.totalorder %s40, %s41
      %p55 = scmp.eq.s32.totalorder %s19, 1
      %p56 = por %p54, %p55
      %p58 = scmp.ne.s32.totalorder %s41, %s57
      %p59 = scmp.eq.s32.totalorder %s19, 0
      %p60 = por %p58, %p59
      %s61 = ssub.s32 %s20, %s32
      %p62 = scmp.eq.s32.totalorder %s61, 0
      %s64 = sadd.s32 %s63, 1
      %s65 = scalar_select %p62, %s63, %s64
      %p68 = pneg %p62
      %p69 = scmp.eq.s32.totalorder %s13, 1
      %p70 = por %p68, %p69
      %p71 = scmp.ne.s32.totalorder %s63, %s66
      %p72 = scmp.eq.s32.totalorder %s13, 0
      %p73 = por %p71, %p72
      %p74 = scmp.ne.s32.totalorder %s63, %s66
      %p75 = scmp.eq.s32.totalorder %s18, 1
      %p76 = por %p74, %p75
      %p77 = scmp.ne.s32.totalorder %s66, %s67
      %p78 = scmp.eq.s32.totalorder %s18, 0
      %p79 = por %p77, %p78
      %p80 = scmp.ne.s32.totalorder %s66, %s67
      %p81 = scmp.eq.s32.totalorder %s19, 1
      %p82 = por %p80, %p81
      %p84 = scmp.ne.s32.totalorder %s67, %s83
      %p85 = scmp.eq.s32.totalorder %s19, 0
      %p86 = por %p84, %p85
      %s87 = ssub.s32 %s21, %s28
      %p88 = scmp.eq.s32.totalorder %s87, 0
      %s90 = sadd.s32 %s89, 1
      %s91 = scalar_select %p88, %s89, %s90
      %p94 = pneg %p88
      %p95 = scmp.eq.s32.totalorder %s13, 1
      %p96 = por %p94, %p95
      %p97 = scmp.ne.s32.totalorder %s89, %s92
      %p98 = scmp.eq.s32.totalorder %s13, 0
      %p99 = por %p97, %p98
      %p100 = scmp.ne.s32.totalorder %s89, %s92
      %p101 = scmp.eq.s32.totalorder %s18, 1
      %p102 = por %p100, %p101
      %p103 = scmp.ne.s32.totalorder %s92, %s93
      %p104 = scmp.eq.s32.totalorder %s18, 0
      %p105 = por %p103, %p104
      %p106 = scmp.ne.s32.totalorder %s92, %s93
      %p107 = scmp.eq.s32.totalorder %s19, 1
      %p108 = por %p106, %p107
      %p110 = scmp.ne.s32.totalorder %s93, %s109
      %p111 = scmp.eq.s32.totalorder %s19, 0
      %p112 = por %p110, %p111
      %s113 = ssub.s32 %s21, %s28
      %p114 = scmp.eq.s32.totalorder %s113, 0
      %s116 = sadd.s32 %s115, 1
      %s117 = scalar_select %p114, %s115, %s116
      %p120 = pneg %p114
      %p121 = scmp.eq.s32.totalorder %s13, 1
      %p122 = por %p120, %p121
      %p123 = scmp.ne.s32.totalorder %s115, %s118
      %p124 = scmp.eq.s32.totalorder %s13, 0
      %p125 = por %p123, %p124
      %p126 = scmp.ne.s32.totalorder %s115, %s118
      %p127 = scmp.eq.s32.totalorder %s18, 1
      %p128 = por %p126, %p127
      %p129 = scmp.ne.s32.totalorder %s118, %s119
      %p130 = scmp.eq.s32.totalorder %s18, 0
      %p131 = por %p129, %p130
      %p132 = scmp.ne.s32.totalorder %s118, %s119
      %p133 = scmp.eq.s32.totalorder %s19, 1
      %p134 = por %p132, %p133
      %p136 = scmp.ne.s32.totalorder %s119, %s135
      %p137 = scmp.eq.s32.totalorder %s19, 0
      %p138 = por %p136, %p137
      %s139 = ssub.s32 %s20, %s32
      %s140 = ssub.s32 %s21, %s28
      %s141 = sor.u32 %s139, %s140
      %p142 = scmp.eq.s32.totalorder %s141, 0
      %s144 = sadd.s32 %s143, 1
      %s145 = scalar_select %p142, %s143, %s144
      %p148 = pneg %p142
      %p149 = scmp.eq.s32.totalorder %s13, 1
      %p150 = por %p148, %p149
      %p151 = scmp.ne.s32.totalorder %s143, %s146
      %p152 = scmp.eq.s32.totalorder %s13, 0
      %p153 = por %p151, %p152
      %p154 = scmp.ne.s32.totalorder %s143, %s146
      %p155 = scmp.eq.s32.totalorder %s18, 1
      %p156 = por %p154, %p155
      %p157 = scmp.ne.s32.totalorder %s146, %s147
      %p158 = scmp.eq.s32.totalorder %s18, 0
      %p159 = por %p157, %p158
      %p160 = scmp.ne.s32.totalorder %s146, %s147
      %p161 = scmp.eq.s32.totalorder %s19, 1
      %p162 = por %p160, %p161
      %p164 = scmp.ne.s32.totalorder %s147, %s163
      %p165 = scmp.eq.s32.totalorder %s19, 0
      %p166 = por %p164, %p165
      %p167 = scmp.le.s32.totalorder 1, %s13
      %p168 = scmp.lt.s32.totalorder %s13, 3
      %p169 = pnand %p167, %p168
      %p170 = pneg %p169
      // Predicated region
      $region9: #{tpu_custom_call.1} parent=5 // pred_check
        _
      $region10: #{tpu_custom_call.1} parent=5 // pred_check_branch
        %172 = sbr.rel (%p169) target = $region12
      $region11: #{tpu_custom_call.1} parent=5 // pred_region
        %s173 = ssub.s32 %s13, 1
        // Predicated region
        $region13: #{tpu_custom_call.1} parent=11 // pred_check
          %p174 = pneg %p105
        $region14: #{tpu_custom_call.1} parent=11 // pred_check_branch
          %176 = sbr.rel (%p174) target = $region16
        $region15: #{tpu_custom_call.1} parent=11 // pred_region
          %p177 = scmp.lt.s32.totalorder %s23, 0
          %s178 = scalar_select %p177, %s23, 0
          %s179 = smul.addr %s178, 4
          %s180 = scalar_lea.vmem %s2, %s179
        $region16: #{tpu_custom_call.1} parent=11 // pred_fallthru
          _
        // Predicated region
        $region17: #{tpu_custom_call.1} parent=11 // pred_check
          %p181 = pneg %p131
        $region18: #{tpu_custom_call.1} parent=11 // pred_check_branch
          %183 = sbr.rel (%p181) target = $region20
        $region19: #{tpu_custom_call.1} parent=11 // pred_region
          %p184 = scmp.lt.s32.totalorder %s23, 0
          %s185 = scalar_select %p184, %s23, 0
          %s186 = smul.addr %s185, 4
          %s187 = scalar_lea.vmem %s3, %s186
        $region20: #{tpu_custom_call.1} parent=11 // pred_fallthru
          _
      $region12: #{tpu_custom_call.1} parent=5 // pred_fallthru
        _
      %p188 = scmp.lt.s32.totalorder %s13, 2
      // Predicated region
      $region21: #{tpu_custom_call.1} parent=5 // pred_check
        %p189 = pneg %p188
      $region22: #{tpu_custom_call.1} parent=5 // pred_check_branch
        %191 = sbr.rel (%p189) target = $region24
      $region23: #{tpu_custom_call.1} parent=5 // pred_region
        // Predicated region
        $region25: #{tpu_custom_call.1} parent=23 // pred_check
          %p192 = pneg %p47
        $region26: #{tpu_custom_call.1} parent=23 // pred_check_branch
          %194 = sbr.rel (%p192) target = $region28
        $region27: #{tpu_custom_call.1} parent=23 // pred_region
          %p195 = scmp.lt.s32.totalorder %s20, 1
          %s196 = scalar_select %p195, %s20, 1
          %p197 = scmp.lt.s32.totalorder %s21, 0
          %s198 = scalar_select %p197, %s21, 0
          %s199 = smul.addr %s198, 2
          %s200 = smul.addr %s196, 2
          %s201 = sadd.s32 %s199, %s200
          %s202 = smul.addr %s201, 4
          %s203 = scalar_lea.vmem %s0, %s202
        $region28: #{tpu_custom_call.1} parent=23 // pred_fallthru
          _
        // Predicated region
        $region29: #{tpu_custom_call.1} parent=23 // pred_check
          %p204 = pneg %p73
        $region30: #{tpu_custom_call.1} parent=23 // pred_check_branch
          %206 = sbr.rel (%p204) target = $region32
        $region31: #{tpu_custom_call.1} parent=23 // pred_region
          %p207 = scmp.lt.s32.totalorder %s20, 1
          %s208 = scalar_select %p207, %s20, 1
          %s209 = smul.addr %s208, 2
          %s210 = smul.addr %s209, 4
          %s211 = scalar_lea.vmem %s1, %s210
        $region32: #{tpu_custom_call.1} parent=23 // pred_fallthru
          _
      $region24: #{tpu_custom_call.1} parent=5 // pred_fallthru
        _
      %p212 = scmp.le.s32.totalorder 1, %s13
      %p213 = scmp.lt.s32.totalorder %s13, 3
      %p214 = pnand %p212, %p213
      %p215 = pneg %p214
      // Predicated region
      $region33: #{tpu_custom_call.1} parent=5 // pred_check
        _
      $region34: #{tpu_custom_call.1} parent=5 // pred_check_branch
        %217 = sbr.rel (%p214) target = $region36
      $region35: #{tpu_custom_call.1} parent=5 // pred_region
        %s218 = ssub.s32 %s13, 1
        %p219 = scmp.lt.s32.totalorder %s22, 1
        %s220 = scalar_select %p219, %s22, 1
        %p221 = scmp.lt.s32.totalorder %s23, 0
        %s222 = scalar_select %p221, %s23, 0
        %s223 = smul.addr %s222, 2
        %s224 = smul.addr %s220, 2
        %s225 = sadd.s32 %s223, %s224
        %s226 = smul.addr %s225, 4
        %s227 = scalar_lea.vmem %s0, %s226
        %p228 = pneg %p53
        %p229 = pneg %p50
        %p230 = scmp.lt.s32.totalorder %s22, 1
        %s231 = scalar_select %p230, %s22, 1
        %s232 = smul.addr %s231, 2
        %s233 = smul.addr %s232, 4
        %s234 = scalar_lea.vmem %s1, %s233
        %p235 = pneg %p79
        %p236 = pneg %p76
        %p237 = scmp.lt.s32.totalorder %s23, 0
        %s238 = scalar_select %p237, %s23, 0
        %s239 = smul.addr %s238, 4
        %s240 = scalar_lea.vmem %s2, %s239
        %p241 = pneg %p105
        %p242 = pneg %p102
        %p243 = scmp.lt.s32.totalorder %s23, 0
        %s244 = scalar_select %p243, %s23, 0
        %s245 = smul.addr %s244, 4
        %s246 = scalar_lea.vmem %s3, %s245
        %p247 = pneg %p131
        %p248 = pneg %p128
        %p249 = pneg %p159
        %p250 = pneg %p156
        %s251 = sand.u32 %s146, 1
        %s252 = scalar_lea.sflag [#allocation3], %s251
        %s253 = sand.u32 %s146, 1
        %s254 = smul.addr %s253, 8
        %s255 = scalar_lea.vmem [#allocation2], %s254
        %p256 = scmp.lt.s32.totalorder %s22, 1
        %s257 = scalar_select %p256, %s22, 1
        %p258 = scmp.lt.s32.totalorder %s23, 0
        %s259 = scalar_select %p258, %s23, 0
        %s260 = smul.addr %s259, 2
        %s261 = smul.addr %s257, 2
        %s262 = sadd.s32 %s260, %s261
        %s263 = smul.addr %s262, 4
        %s264 = scalar_lea.vmem %s0, %s263
        %p265 = scmp.lt.s32.totalorder %s22, 1
        %s266 = scalar_select %p265, %s22, 1
        %s267 = smul.addr %s266, 2
        %s268 = smul.addr %s267, 4
        %s269 = scalar_lea.vmem %s1, %s268
        %p270 = scmp.lt.s32.totalorder %s23, 0
        %s271 = scalar_select %p270, %s23, 0
        %s272 = smul.addr %s271, 4
        %s273 = scalar_lea.vmem %s2, %s272
        %p274 = scmp.lt.s32.totalorder %s23, 0
        %s275 = scalar_select %p274, %s23, 0
        %s276 = smul.addr %s275, 4
        %s277 = scalar_lea.vmem %s3, %s276
        %v278 = vld [vmem:[%s273] sm:$0xf]
        %v279 = vld [vmem:[%s273 + $0x4] sm:$0xf]
        %v280 = vld [vmem:[%s277] sm:$0xf]
        %v281 = vld [vmem:[%s277 + $0x4] sm:$0xf]
        %v282 = vld [vmem:[%s264] sm:$0xff]
        %v283 = vld [vmem:[%s269] sm:$0x77]
        %285 = vset.pattern.permute.xlu0 0
        %286 = vperm.xlu0 %285, %v280
        %v287 = vpop.permute.xlu0 %286
        %v290 = vcombine.high %v283, %v283
        %vm291 = vcmask 23552
        %v293 = vsel %vm291, %v278, 0
        %vm295 = vcmask 1042432
        %v296 = vsel %vm295, %v283, 0
        %v298 = vsel %vm295, %v290, 0
        %300 = vmatprep.subr.mxu0 0.0
        %301 = vmatpush1.msra.mxu0 0.0
        %302 = vmatprep.subr.mxu0 0.0
        %303 = vmatpush1.msra.mxu0 0.0
        %304 = vmatprep.subr.mxu0 0.0
        %305 = vmatpush1.msra.mxu0 0.0
        %306 = vmatprep.subr.mxu0 0.0
        %307 = vmatpush1.msra.mxu0 0.0
        %308 = vmatprep.subr.mxu0 0.0
        %309 = vmatpush1.msra.mxu0 0.0
        %310 = vmatprep.subr.mxu0 0.0
        %311 = vmatpush1.msra.mxu0 0.0
        %312 = vmatprep.subr.mxu0 0.0
        %313 = vmatpush1.msra.mxu0 0.0
        %314 = vmatprep.subr.mxu0 0.0
        %315 = vmatpush1.msra.mxu0 0.0
        %316 = vmatprep.subr.mxu0 0.0
        %317 = vmatpush1.msra.mxu0 0.0
        %318 = vmatprep.subr.mxu0 0.0
        %319 = vmatpush1.msra.mxu0 0.0
        %320 = vmatprep.subr.mxu0 0.0
        %321 = vmatpush1.msra.mxu0 0.0
        %322 = vmatprep.subr.mxu0 0.0
        %323 = vmatpush1.msra.mxu0 0.0
        %324 = vmatprep.subr.mxu0 0.0
        %325 = vmatpush1.msra.mxu0 0.0
        %326 = vmatprep.subr.mxu0 0.0
        %327 = vmatpush1.msra.mxu0 0.0
        %328 = vmatprep.subr.mxu0 0.0
        %329 = vmatpush1.msra.mxu0 0.0
        %330 = vmatprep.subr.mxu0 %v298
        %331 = vmatpush1.msra.mxu0 %v296
        %332 = vmatprep.subr.mxu0 0.0
        %333 = vmatpush2.msra.mxu0 0.0
        %334 = vmatprep.subr.mxu0 0.0
        %335 = vmatpush2.msra.mxu0 0.0
        %336 = vmatprep.subr.mxu0 0.0
        %337 = vmatpush2.msra.mxu0 0.0
        %338 = vmatprep.subr.mxu0 0.0
        %339 = vmatpush2.msra.mxu0 0.0
        %340 = vmatprep.subr.mxu0 0.0
        %341 = vmatpush2.msra.mxu0 0.0
        %342 = vmatprep.subr.mxu0 0.0
        %343 = vmatpush2.msra.mxu0 0.0
        %344 = vmatprep.subr.mxu0 0.0
        %345 = vmatpush2.msra.mxu0 0.0
        %346 = vmatprep.subr.mxu0 0.0
        %347 = vmatpush2.msra.mxu0 0.0
        %348 = vmatprep.subr.mxu0 0.0
        %349 = vmatpush2.msra.mxu0 0.0
        %350 = vmatprep.subr.mxu0 0.0
        %351 = vmatpush2.msra.mxu0 0.0
        %352 = vmatprep.subr.mxu0 0.0
        %353 = vmatpush2.msra.mxu0 0.0
        %354 = vmatprep.subr.mxu0 0.0
        %355 = vmatpush2.msra.mxu0 0.0
        %356 = vmatprep.subr.mxu0 0.0
        %357 = vmatpush2.msra.mxu0 0.0
        %358 = vmatprep.subr.mxu0 0.0
        %359 = vmatpush2.msra.mxu0 0.0
        %360 = vmatprep.subr.mxu0 0.0
        %361 = vmatpush2.msra.mxu0 0.0
        %362 = vmatprep.subr.mxu0 0.0
        %363 = vmatpush2.msra.mxu0 0.0
        %364 = vmatprep.mubr.f32.mxu0 0.0
        %365 = vmatmul.mubr.f32.gmra.mxu0 %v293
        %v366 = vpop.f32.mrf.mxu0
        %v367 = vadd.f32 %v287, %v366
        %v368 = vpop.f32.mrf.mxu0
        %v369 = vadd.f32 %v287, %v368
        %370 = vdwg.mxu0
        %372 = vset.pattern.permute.xlu0 0
        %373 = vperm.xlu0 %372, %v281
        %v374 = vpop.permute.xlu0 %373
        %v377 = vsel %vm291, %v279, 0
        %379 = vmatprep.subr.mxu0 0.0
        %380 = vmatpush1.msra.mxu0 0.0
        %381 = vmatprep.subr.mxu0 0.0
        %382 = vmatpush1.msra.mxu0 0.0
        %383 = vmatprep.subr.mxu0 0.0
        %384 = vmatpush1.msra.mxu0 0.0
        %385 = vmatprep.subr.mxu0 0.0
        %386 = vmatpush1.msra.mxu0 0.0
        %387 = vmatprep.subr.mxu0 0.0
        %388 = vmatpush1.msra.mxu0 0.0
        %389 = vmatprep.subr.mxu0 0.0
        %390 = vmatpush1.msra.mxu0 0.0
        %391 = vmatprep.subr.mxu0 0.0
        %392 = vmatpush1.msra.mxu0 0.0
        %393 = vmatprep.subr.mxu0 0.0
        %394 = vmatpush1.msra.mxu0 0.0
        %395 = vmatprep.subr.mxu0 0.0
        %396 = vmatpush1.msra.mxu0 0.0
        %397 = vmatprep.subr.mxu0 0.0
        %398 = vmatpush1.msra.mxu0 0.0
        %399 = vmatprep.subr.mxu0 0.0
        %400 = vmatpush1.msra.mxu0 0.0
        %401 = vmatprep.subr.mxu0 0.0
        %402 = vmatpush1.msra.mxu0 0.0
        %403 = vmatprep.subr.mxu0 0.0
        %404 = vmatpush1.msra.mxu0 0.0
        %405 = vmatprep.subr.mxu0 0.0
        %406 = vmatpush1.msra.mxu0 0.0
        %407 = vmatprep.subr.mxu0 0.0
        %408 = vmatpush1.msra.mxu0 0.0
        %409 = vmatprep.subr.mxu0 %v298
        %410 = vmatpush1.msra.mxu0 %v296
        %411 = vmatprep.subr.mxu0 0.0
        %412 = vmatpush2.msra.mxu0 0.0
        %413 = vmatprep.subr.mxu0 0.0
        %414 = vmatpush2.msra.mxu0 0.0
        %415 = vmatprep.subr.mxu0 0.0
        %416 = vmatpush2.msra.mxu0 0.0
        %417 = vmatprep.subr.mxu0 0.0
        %418 = vmatpush2.msra.mxu0 0.0
        %419 = vmatprep.subr.mxu0 0.0
        %420 = vmatpush2.msra.mxu0 0.0
        %421 = vmatprep.subr.mxu0 0.0
        %422 = vmatpush2.msra.mxu0 0.0
        %423 = vmatprep.subr.mxu0 0.0
        %424 = vmatpush2.msra.mxu0 0.0
        %425 = vmatprep.subr.mxu0 0.0
        %426 = vmatpush2.msra.mxu0 0.0
        %427 = vmatprep.subr.mxu0 0.0
        %428 = vmatpush2.msra.mxu0 0.0
        %429 = vmatprep.subr.mxu0 0.0
        %430 = vmatpush2.msra.mxu0 0.0
        %431 = vmatprep.subr.mxu0 0.0
        %432 = vmatpush2.msra.mxu0 0.0
        %433 = vmatprep.subr.mxu0 0.0
        %434 = vmatpush2.msra.mxu0 0.0
        %435 = vmatprep.subr.mxu0 0.0
        %436 = vmatpush2.msra.mxu0 0.0
        %437 = vmatprep.subr.mxu0 0.0
        %438 = vmatpush2.msra.mxu0 0.0
        %439 = vmatprep.subr.mxu0 0.0
        %440 = vmatpush2.msra.mxu0 0.0
        %441 = vmatprep.subr.mxu0 0.0
        %442 = vmatpush2.msra.mxu0 0.0
        %443 = vmatprep.mubr.f32.mxu0 0.0
        %444 = vmatmul.mubr.f32.gmra.mxu0 %v377
        %v445 = vpop.f32.mrf.mxu0
        %v446 = vadd.f32 %v374, %v445
        %v447 = vpop.f32.mrf.mxu0
        %v448 = vadd.f32 %v374, %v447
        %449 = vdwg.mxu0
        %v450 = vmax.f32 %v367, 0.0
        %v451 = vmax.f32 %v369, 0.0
        %v452 = vmax.f32 %v446, 0.0
        %v453 = vmax.f32 %v448, 0.0
        %v455 = vcombine.high %v282, %v282
        %vm457 = vcmask 1043456
        %v458 = vsel %vm457, %v282, 0.0
        %v459 = vsel %vm457, %v455, 0.0
        %v460 = vadd.f32 %v458, %v459
        %461 = vadd.xlane.f32.xlu0 %v460
        %v462 = vpop.xlane.xlu0 %461
        %v463 = vmul.f32 %v462, 0.00390625
        %v466 = vunpack.c.l.s4 839922192
        %v467 = vunpack.c.0.s8 %v466
        %v468 = vlaneseq
        %v469 = vshrl.u32 %v468, 7
        %v470 = vsub.s32 %v467, %v469
        %v471 = vrot.slane %v463, %v470
        %v473 = vsub.f32 %v282, %v471
        %v474 = vmul.f32 %v473, %v473
        %v476 = vcombine.high %v474, %v474
        %v478 = vsel %vm457, %v474, 0.0
        %v479 = vsel %vm457, %v476, 0.0
        %v480 = vadd.f32 %v478, %v479
        %481 = vadd.xlane.f32.xlu0 %v480
        %v482 = vpop.xlane.xlu0 %481
        %v483 = vmul.f32 %v482, 0.003921569
        %v484 = vadd.f32 %v483, 1e-05
        %v485 = vrsqrt.pop %v484
        %v488 = vunpack.c.l.s4 839922192
        %v489 = vunpack.c.0.s8 %v488
        %v490 = vlaneseq
        %v491 = vshrl.u32 %v490, 7
        %v492 = vsub.s32 %v489, %v491
        %v493 = vrot.slane %v485, %v492
        %v495 = vmul.f32 %v473, %v493
        %v498 = vcombine.low %v452, %v453
        %v500 = vmul.f32 %v495, %v498
        %v503 = vcombine.low %v450, %v451
        %v505 = vadd.f32 %v500, %v503
        %506 = vst [vmem:[%s255] sm:$0xff] %v505
        %s507 = sand.u32 %s146, 1
        %s508 = scalar_lea.sflag [#allocation3], %s507
        %s509 = sand.u32 %s146, 1
        %s510 = smul.addr %s509, 8
        %s511 = scalar_lea.vmem [#allocation2], %s510
        // Predicated region
        $region37: #{tpu_custom_call.1} parent=35 // pred_check
          %p512 = pneg %p156
        $region38: #{tpu_custom_call.1} parent=35 // pred_check_branch
          %514 = sbr.rel (%p512) target = $region40
        $region39: #{tpu_custom_call.1} parent=35 // pred_region
          %s516 = ssub.s32 128, 128
          %517 = vsyncadd %s508, %s516
          %s518 = smul.addr %s23, 2
          %s519 = smul.addr %s22, 2
          %s520 = sadd.s32 %s518, %s519
          %s521 = smul.addr %s520, 64
          %s522 = scalar_lea.hbm %s4, %s521
          %s524 = sshll.u32 %s511, 4
          %s525 = int_to_ptr.vmem [resolvable:$true] %s524
          %527 = dma.vmem_to_hbm [thread:$0]  %s525, 128, %s522, %s508
        $region40: #{tpu_custom_call.1} parent=35 // pred_fallthru
          _
      $region36: #{tpu_custom_call.1} parent=5 // pred_fallthru
        _
      %p528 = scmp.le.s32.totalorder 2, %s13
      // Predicated region
      $region41: #{tpu_custom_call.1} parent=5 // pred_check
        %p529 = pneg %p528
      $region42: #{tpu_custom_call.1} parent=5 // pred_check_branch
        %531 = sbr.rel (%p529) target = $region44
      $region43: #{tpu_custom_call.1} parent=5 // pred_region
        %s532 = ssub.s32 %s13, 2
        // Predicated region
        $region45: #{tpu_custom_call.1} parent=43 // pred_check
          %p533 = pneg %p162
        $region46: #{tpu_custom_call.1} parent=43 // pred_check_branch
          %535 = sbr.rel (%p533) target = $region48
        $region47: #{tpu_custom_call.1} parent=43 // pred_region
          %s536 = sand.u32 %s147, 1
          %s537 = scalar_lea.sflag [#allocation3], %s536
          %s538 = sand.u32 %s147, 1
          %s539 = smul.addr %s538, 8
          %s540 = scalar_lea.vmem [#allocation2], %s539
          %541 = dma.done %s537, 128
        $region48: #{tpu_custom_call.1} parent=43 // pred_fallthru
          _
      $region44: #{tpu_custom_call.1} parent=5 // pred_fallthru
        _
    $region6: #{tpu_custom_call.1} parent=1 // loop_footer
      %s17 = sadd.s32 1, %s13
    $region7: #{tpu_custom_call.1} parent=1 // loop_footer_branch
      %12 = sbr.rel target = $region3
    $region8: #{tpu_custom_call.1} parent=1 // loop_exit
      _
    %542 = vsyncpa [#allocation3], 1
    %s543 = scalar_lea.sflag [#allocation3], 1
    %544 = vsyncpa %s543, 1

</llo_original>
